<compile_context>
chip_gen: v7x
topology: tpu7x:2x2x1
jax: 0.10.0
libtpu: 0.0.40
codegen_flags: <defaults>
</compile_context>

<pallas_src>
import jax
import jax.numpy as jnp
from jax.experimental import pallas as pl
from jax.experimental.pallas import tpu as pltpu


def _prompt_assemble_kernel(prefix_ref, ctx_ref, suffix_ref, out_ref):
    """Assemble prompts for a batch of classes with three streaming sub-stores.

    Block shapes (per grid step, `tc` classes at a time):
      prefix_ref : (tc, 1,     d)
      ctx_ref    : (n_ctx,     d)   -- shared, resident (constant index_map)
      suffix_ref : (tc, n_suf, d)
      out_ref    : (tc, seq,   d)   with seq = 1 + n_ctx + n_suf
    """
    tc = out_ref.shape[0]
    n_ctx, d = ctx_ref.shape

    # 1) SOS-token rows.
    out_ref[:, 0:1, :] = prefix_ref[...]

    # 2) Shared context rows, broadcast over the class batch.  Hoisted once
    #    per block and stored directly -- never materialized inside a concat.
    out_ref[:, 1:1 + n_ctx, :] = jnp.broadcast_to(
        ctx_ref[...][None, :, :], (tc, n_ctx, d)
    )

    # 3) Class-name + EOS + pad rows.
    out_ref[:, 1 + n_ctx:, :] = suffix_ref[...]


def _choose_class_tiling(n_cls, per_class_bytes, class_block, target_block_bytes):
    """Pick (tc, n_cls_padded) minimizing wrapper pad/strip passes.

    Prefer the largest divisor of n_cls below the target block size: zero class
    padding and zero output-strip pass.  Only when all divisors are far below
    the target (e.g. prime n_cls) do we accept a minimally padded last block.
    """
    if class_block is not None:
        tc_target = int(max(1, min(class_block, n_cls)))
    else:
        tc_target = int(max(1, min(n_cls, target_block_bytes // per_class_bytes)))

    tc_div = 1
    for d in range(tc_target, 0, -1):
        if n_cls % d == 0:
            tc_div = d
            break
    if tc_div >= max(1, tc_target // 2):
        return tc_div, n_cls

    n_blocks = pl.cdiv(n_cls, tc_target)
    return tc_target, n_blocks * tc_target


def prompt_learner_forward(token_prefix, ctx, token_suffix, *, class_block=None):
    """Pallas equivalent of PromptLearner.forward() with cls_token_position='end'.

    Args:
      token_prefix: (n_cls, 1,     ctx_dim)  -- SOS-token embeddings.
      ctx:          (n_ctx, ctx_dim)         -- learned shared context (2-D case,
                                                 broadcast to every class).
      token_suffix: (n_cls, n_suf, ctx_dim)  -- class-name + EOS + pad embeddings.
      class_block:  optional override for the number of classes per grid step.

    Returns:
      prompts: (n_cls, 1 + n_ctx + n_suf, ctx_dim)
    """
    n_cls, _, ctx_dim = token_prefix.shape
    n_ctx = ctx.shape[0]
    n_suf = token_suffix.shape[1]
    seq = 1 + n_ctx + n_suf
    dtype = token_prefix.dtype
    itemsize = jnp.dtype(dtype).itemsize

    if ctx.dtype != dtype:
        ctx = ctx.astype(dtype)

    # ---- Class-batch size: target ~4 MiB output blocks (amortizes the
    # ~0.35 us/step pipeline overhead at 0.8-3.2 TB/s HBM) with no class
    # padding in the common case. ------------------------------------------
    per_class_bytes = seq * ctx_dim * itemsize
    target_block_bytes = 4 * 1024 * 1024
    tc, n_cls_pad = _choose_class_tiling(
        n_cls, per_class_bytes, class_block, target_block_bytes
    )
    n_blocks = n_cls_pad // tc

    if n_cls_pad != n_cls:
        pad_c = n_cls_pad - n_cls
        token_prefix = jnp.pad(token_prefix, ((0, pad_c), (0, 0), (0, 0)))
        token_suffix = jnp.pad(token_suffix, ((0, pad_c), (0, 0), (0, 0)))

    # Advisory cost: pure data movement (read prefix+suffix+ctx, write prompts).
    read_bytes = (
        n_cls_pad * (1 + n_suf) * ctx_dim * itemsize + n_ctx * ctx_dim * itemsize
    )
    write_bytes = n_cls_pad * seq * ctx_dim * itemsize
    cost = pl.CostEstimate(
        flops=0, transcendentals=0, bytes_accessed=read_bytes + write_bytes
    )

    prompts = pl.pallas_call(
        _prompt_assemble_kernel,
        out_shape=jax.ShapeDtypeStruct((n_cls_pad, seq, ctx_dim), dtype),
        grid_spec=pltpu.PrefetchScalarGridSpec(
            num_scalar_prefetch=0,
            grid=(n_blocks,),
            in_specs=[
                # per-block prefix rows (tc classes at a time)
                pl.BlockSpec((tc, 1, ctx_dim), lambda i: (i, 0, 0)),
                # shared context vectors: constant block index -> VMEM-resident
                pl.BlockSpec((n_ctx, ctx_dim), lambda i: (0, 0)),
                # per-block suffix rows
                pl.BlockSpec((tc, n_suf, ctx_dim), lambda i: (i, 0, 0)),
            ],
            out_specs=pl.BlockSpec((tc, seq, ctx_dim), lambda i: (i, 0, 0)),
        ),
        compiler_params=pltpu.CompilerParams(
            dimension_semantics=("parallel",),
            # Double-buffered in+out at ~4 MiB output blocks is ~16 MiB;
            # 48 MiB stays under v7x's 64 MiB physical VMEM with headroom and
            # is comfortable on v5e/v6e (128 MiB physical).
            vmem_limit_bytes=48 * 1024 * 1024,
        ),
        cost_estimate=cost,
    )(token_prefix, ctx, token_suffix)

    if n_cls_pad != n_cls:
        prompts = prompts[:n_cls]
    return prompts


if __name__ == "__main__":
    # Small deterministic setup consistent with the module:
    #   ctx_init = 'a photo of a'  ->  n_ctx = 4
    #   n_cls classes, embedding dim ctx_dim, total prompt length seq.
    key = jax.random.PRNGKey(0)
    k_pre, k_ctx, k_suf, k_pre2, k_suf2, k_pre3, k_suf3 = jax.random.split(key, 7)

    def reference(prefix, ctx, suffix):
        n_cls = prefix.shape[0]
        ctx_b = jnp.broadcast_to(ctx[None], (n_cls,) + ctx.shape)
        return jnp.concatenate([prefix, ctx_b, suffix], axis=1)

    # --- Test 1: small f32 shapes, single block, narrow (non-128) lane dim. ---
    n_cls, n_ctx, ctx_dim, seq = 3, 4, 32, 8
    n_suf = seq - 1 - n_ctx
    dtype = jnp.float32
    token_prefix = jax.random.normal(k_pre, (n_cls, 1, ctx_dim), dtype) * 0.02
    token_suffix = jax.random.normal(k_suf, (n_cls, n_suf, ctx_dim), dtype) * 0.02
    ctx_vectors = jax.random.normal(k_ctx, (n_ctx, ctx_dim), dtype) * 0.02

    prompts = jax.block_until_ready(
        prompt_learner_forward(token_prefix, ctx_vectors, token_suffix)
    )
    ref = reference(token_prefix, ctx_vectors, token_suffix)
    assert prompts.shape == (n_cls, seq, ctx_dim), prompts.shape
    assert prompts.dtype == dtype
    assert jnp.allclose(prompts, ref), "Pallas output mismatch vs reference (test 1)"

    # --- Test 2: bf16, multi-block grid via divisor tiling (tc=2, 5 blocks,
    #             no class padding, no strip pass). ------------------------------
    n_cls2, seq2, ctx_dim2 = 10, 16, 128
    n_suf2 = seq2 - 1 - n_ctx
    dt2 = jnp.bfloat16
    token_prefix2 = (jax.random.normal(k_pre2, (n_cls2, 1, ctx_dim2)) * 0.02).astype(dt2)
    token_suffix2 = (jax.random.normal(k_suf2, (n_cls2, n_suf2, ctx_dim2)) * 0.02).astype(dt2)
    ctx_vectors2 = (jax.random.normal(k_ctx, (n_ctx, ctx_dim2)) * 0.02).astype(dt2)

    prompts2 = jax.block_until_ready(
        prompt_learner_forward(token_prefix2, ctx_vectors2, token_suffix2, class_block=4)
    )
    ref2 = reference(token_prefix2, ctx_vectors2, token_suffix2)
    assert prompts2.shape == (n_cls2, seq2, ctx_dim2), prompts2.shape
    assert prompts2.dtype == dt2
    assert jnp.allclose(prompts2, ref2), "Pallas output mismatch vs reference (test 2)"

    # --- Test 3: prime class count -> padded trailing block + strip path. ------
    n_cls3, seq3, ctx_dim3 = 7, 8, 128
    n_suf3 = seq3 - 1 - n_ctx
    token_prefix3 = jax.random.normal(k_pre3, (n_cls3, 1, ctx_dim3), jnp.float32) * 0.02
    token_suffix3 = jax.random.normal(k_suf3, (n_cls3, n_suf3, ctx_dim3), jnp.float32) * 0.02
    ctx_vectors3 = jax.random.normal(k_ctx, (n_ctx, ctx_dim3), jnp.float32) * 0.02

    prompts3 = jax.block_until_ready(
        prompt_learner_forward(token_prefix3, ctx_vectors3, token_suffix3, class_block=4)
    )
    ref3 = reference(token_prefix3, ctx_vectors3, token_suffix3)
    assert prompts3.shape == (n_cls3, seq3, ctx_dim3), prompts3.shape
    assert jnp.allclose(prompts3, ref3), "Pallas output mismatch vs reference (test 3)"

    # TODO(synk): 'middle'/'front' cls_token_position variants use per-class
    # name_lens-dependent ragged slicing; only the default 'end' path (and the
    # shared 2-D ctx) is implemented here.
    print("KERNEL_OK")
</pallas_src>

<mosaic_0001>
module attributes {stable_mosaic.version = 11 : i64} {
  func.func @_prompt_assemble_kernel(%arg0: i32, %arg1: memref<3x1x32xf32, #tpu.memory_space<vmem>>, %arg2: memref<4x32xf32, #tpu.memory_space<vmem>>, %arg3: memref<3x3x32xf32, #tpu.memory_space<vmem>>, %arg4: memref<3x8x32xf32, #tpu.memory_space<vmem>>) attributes {dimension_semantics = [#tpu.dimension_semantics<parallel>], iteration_bounds = array<i64: 1>, scalar_prefetch = 0 : i64, scratch_operands = 0 : i64, tpu.core_type = #tpu.core_type<tc>, window_params = [{transform_indices = @transform_0, window_bounds = array<i64: 3, 1, 32>}, {pipeline_mode = #tpu.pipeline_mode<synchronous>, transform_indices = @transform_1, window_bounds = array<i64: 4, 32>}, {transform_indices = @transform_2, window_bounds = array<i64: 3, 3, 32>}, {transform_indices = @transform_3, window_bounds = array<i64: 3, 8, 32>}]} {
    %c0 = arith.constant 0 : index
    %c0_0 = arith.constant 0 : index
    %c0_1 = arith.constant 0 : index
    %0 = vector.load %arg1[%c0, %c0_0, %c0_1] : memref<3x1x32xf32, #tpu.memory_space<vmem>>, vector<3x1x32xf32>
    %c0_2 = arith.constant 0 : index
    %c0_3 = arith.constant 0 : index
    %c0_4 = arith.constant 0 : index
    %1 = vector.load %arg4[%c0_2, %c0_3, %c0_4] : memref<3x8x32xf32, #tpu.memory_space<vmem>>, vector<3x1x32xf32>
    tpu.vector_store %arg4[%c0_2, %c0_3, %c0_4], %0 {strides = array<i32>} : memref<3x8x32xf32, #tpu.memory_space<vmem>>, vector<3x1x32xf32>,
    %c0_5 = arith.constant 0 : index
    %c0_6 = arith.constant 0 : index
    %2 = vector.load %arg2[%c0_5, %c0_6] : memref<4x32xf32, #tpu.memory_space<vmem>>, vector<4x32xf32>
    %3 = vector.shape_cast %2 : vector<4x32xf32> to vector<1x4x32xf32>
    %4 = vector.shape_cast %3 : vector<1x4x32xf32> to vector<1x4x32xf32>
    %5 = vector.broadcast %4 : vector<1x4x32xf32> to vector<3x4x32xf32>
    %c0_7 = arith.constant 0 : index
    %c1 = arith.constant 1 : index
    %c0_8 = arith.constant 0 : index
    %6 = vector.load %arg4[%c0_7, %c1, %c0_8] : memref<3x8x32xf32, #tpu.memory_space<vmem>>, vector<3x4x32xf32>
    tpu.vector_store %arg4[%c0_7, %c1, %c0_8], %5 {strides = array<i32>} : memref<3x8x32xf32, #tpu.memory_space<vmem>>, vector<3x4x32xf32>,
    %c0_9 = arith.constant 0 : index
    %c0_10 = arith.constant 0 : index
    %c0_11 = arith.constant 0 : index
    %7 = vector.load %arg3[%c0_9, %c0_10, %c0_11] : memref<3x3x32xf32, #tpu.memory_space<vmem>>, vector<3x3x32xf32>
    %c0_12 = arith.constant 0 : index
    %c5 = arith.constant 5 : index
    %c0_13 = arith.constant 0 : index
    %8 = vector.load %arg4[%c0_12, %c5, %c0_13] : memref<3x8x32xf32, #tpu.memory_space<vmem>>, vector<3x3x32xf32>
    tpu.vector_store %arg4[%c0_12, %c5, %c0_13], %7 {strides = array<i32>} : memref<3x8x32xf32, #tpu.memory_space<vmem>>, vector<3x3x32xf32>,
    return
  }
  func.func @transform_0(%arg0: i32) -> (i32, i32, i32) {
    %c0_i32 = arith.constant 0 : i32
    %c0_i32_0 = arith.constant 0 : i32
    %c0_i32_1 = arith.constant 0 : i32
    return %arg0, %c0_i32, %c0_i32_0 : i32, i32, i32
  }
  func.func @transform_1(%arg0: i32) -> (i32, i32) {
    %c0_i32 = arith.constant 0 : i32
    %c0_i32_0 = arith.constant 0 : i32
    %c0_i32_1 = arith.constant 0 : i32
    return %c0_i32, %c0_i32_0 : i32, i32
  }
  func.func @transform_2(%arg0: i32) -> (i32, i32, i32) {
    %c0_i32 = arith.constant 0 : i32
    %c0_i32_0 = arith.constant 0 : i32
    %c0_i32_1 = arith.constant 0 : i32
    return %arg0, %c0_i32, %c0_i32_0 : i32, i32, i32
  }
  func.func @transform_3(%arg0: i32) -> (i32, i32, i32) {
    %c0_i32 = arith.constant 0 : i32
    %c0_i32_0 = arith.constant 0 : i32
    %c0_i32_1 = arith.constant 0 : i32
    return %arg0, %c0_i32, %c0_i32_0 : i32, i32, i32
  }
}

</mosaic_0001>

<llo_original>
// kernel: tpu_custom_call.1
$region0: #{tpu_custom_call.1}
  #allocation0 [shape = 'u32[]', space=smem, size = 0x4, offset = 0x4, fixed_abs, tag = 'smem constant byte address 0x4 - core index']
  #allocation1 [shape = 'u32[144,128]{1,0:T(1,128)}', space=vmem, size = 0x12000, scoped, tag = 'internal scratch']
  %s0 = inlined_call_operand.hbm [shape: f32[3,1,32], index: 0, kind: input, shape index: {}]
  %s1 = inlined_call_operand.hbm [shape: f32[4,32], index: 1, kind: input, shape index: {}]
  %s2 = inlined_call_operand.hbm [shape: f32[3,3,32], index: 2, kind: input, shape index: {}]
  %s3 = inlined_call_operand.hbm [shape: f32[3,8,32], index: 3, kind: output, shape index: {}]
  %s4 = sld [smem:[#allocation0]]
  $region34: #{tpu_custom_call.1} parent=0
    _
  %s6 = ssub.s32 1, %s4
  %s7 = scalar_select 0, %s6, %s4
  $region1: #{tpu_custom_call.1} parent=0
    #allocation2 [shape = 'u8[1536]{0}', space=vmem, size = 0x800, scoped, tag = 'input window, operand 0, single buffered']
    #allocation3 [shape = 's32[1]{0}', space=sflag, size = 0x4, scoped, tag = 'scoped memory for tpu_custom_call.1']
    #allocation4 [shape = 's32[1]{0}', space=sflag, size = 0x4, scoped, tag = 'scoped memory for tpu_custom_call.1']
    #allocation5 [shape = 'u8[2048]{0}', space=vmem, size = 0x800, scoped, tag = 'input window, operand 1, single buffered']
    #allocation6 [shape = 's32[1]{0}', space=sflag, size = 0x4, scoped, tag = 'scoped memory for tpu_custom_call.1']
    #allocation7 [shape = 'u8[6144]{0}', space=vmem, size = 0x1800, scoped, tag = 'input window, operand 2, single buffered']
    #allocation8 [shape = 'u8[12288]{0}', space=vmem, size = 0x3000, scoped, tag = 'output window, operand 0, single buffered']
    %8 = vsyncpa [#allocation3], 0
    %9 = vsyncpa [#allocation6], 0
    %10 = vsyncpa [#allocation4], 0
    // Predicated region
    $region2: #{tpu_custom_call.1} parent=1 // pred_check
      _
    $region3: #{tpu_custom_call.1} parent=1 // pred_check_branch
      %12 = sbr.rel (0) target = $region5
    $region4: #{tpu_custom_call.1} parent=1 // pred_region
      %s14 = ssub.s32 48, 48
      %15 = vsyncadd [#allocation3], %s14
      %s16 = sshll.u32 [#allocation2], 4
      %s17 = int_to_ptr.vmem [resolvable:$true] %s16
      %22 = dma.hbm_to_vmem [thread:$0]  %s0, 48, %s17, [#allocation3], 16, 16, 1
    $region5: #{tpu_custom_call.1} parent=1 // pred_fallthru
      _
    // Predicated region
    $region6: #{tpu_custom_call.1} parent=1 // pred_check
      _
    $region7: #{tpu_custom_call.1} parent=1 // pred_check_branch
      %24 = sbr.rel (0) target = $region9
    $region8: #{tpu_custom_call.1} parent=1 // pred_region
      %s26 = ssub.s32 64, 64
      %27 = vsyncadd [#allocation6], %s26
      %s29 = sshll.u32 [#allocation5], 4
      %s30 = int_to_ptr.vmem [resolvable:$true] %s29
      %32 = dma.hbm_to_vmem [thread:$0]  %s1, 64, %s30, [#allocation6]
    $region9: #{tpu_custom_call.1} parent=1 // pred_fallthru
      _
    // Predicated region
    $region10: #{tpu_custom_call.1} parent=1 // pred_check
      _
    $region11: #{tpu_custom_call.1} parent=1 // pred_check_branch
      %34 = sbr.rel (0) target = $region13
    $region12: #{tpu_custom_call.1} parent=1 // pred_region
      %s36 = ssub.s32 192, 192
      %37 = vsyncadd [#allocation6], %s36
      %s38 = sshll.u32 [#allocation7], 4
      %s39 = int_to_ptr.vmem [resolvable:$true] %s38
      %44 = dma.hbm_to_vmem [thread:$0]  %s2, 192, %s39, [#allocation6], 64, 64, 4
    $region13: #{tpu_custom_call.1} parent=1 // pred_fallthru
      _
    // Predicated region
    $region14: #{tpu_custom_call.1} parent=1 // pred_check
      _
    $region15: #{tpu_custom_call.1} parent=1 // pred_check_branch
      %46 = sbr.rel (0) target = $region17
    $region16: #{tpu_custom_call.1} parent=1 // pred_region
      %47 = dma.done [#allocation3], 48
    $region17: #{tpu_custom_call.1} parent=1 // pred_fallthru
      _
    // Predicated region
    $region18: #{tpu_custom_call.1} parent=1 // pred_check
      _
    $region19: #{tpu_custom_call.1} parent=1 // pred_check_branch
      %49 = sbr.rel (0) target = $region21
    $region20: #{tpu_custom_call.1} parent=1 // pred_region
      %50 = dma.done [#allocation6], 64
    $region21: #{tpu_custom_call.1} parent=1 // pred_fallthru
      _
    // Predicated region
    $region22: #{tpu_custom_call.1} parent=1 // pred_check
      _
    $region23: #{tpu_custom_call.1} parent=1 // pred_check_branch
      %52 = sbr.rel (0) target = $region25
    $region24: #{tpu_custom_call.1} parent=1 // pred_region
      %53 = dma.done [#allocation6], 192
    $region25: #{tpu_custom_call.1} parent=1 // pred_fallthru
      _
    %v54 = vld [vmem:[#allocation2] sm:$0x1]
    %v55 = vld [vmem:[#allocation2 + $0x1] sm:$0x1]
    %v56 = vld [vmem:[#allocation2 + $0x2] sm:$0x1]
    %vm57 = vcmask 253952
    %58 = vst.msk [vmem:[#allocation8] sm:$0x1] %vm57, %v54
    %59 = vst.msk [vmem:[#allocation8 + $0x8] sm:$0x1] %vm57, %v55
    %60 = vst.msk [vmem:[#allocation8 + $0x10] sm:$0x1] %vm57, %v56
    %v61 = vld [vmem:[#allocation5] sm:$0xf]
    %vm62 = vcmask 257024
    %63 = vst.msk [vmem:[#allocation8 + $0x1] sm:$0xf] %vm62, %v61
    %64 = vst.msk [vmem:[#allocation8 + $0x9] sm:$0xf] %vm62, %v61
    %65 = vst.msk [vmem:[#allocation8 + $0x11] sm:$0xf] %vm62, %v61
    %v66 = vld [vmem:[#allocation7] sm:$0x7]
    %v67 = vld [vmem:[#allocation7 + $0x4] sm:$0x7]
    %v68 = vld [vmem:[#allocation7 + $0x8] sm:$0x7]
    %vm69 = vcmask 256000
    %70 = vst.msk [vmem:[#allocation8 + $0x5] sm:$0x7] %vm69, %v66
    %71 = vst.msk [vmem:[#allocation8 + $0xd] sm:$0x7] %vm69, %v67
    %72 = vst.msk [vmem:[#allocation8 + $0x15] sm:$0x7] %vm69, %v68
    // Predicated region
    $region26: #{tpu_custom_call.1} parent=1 // pred_check
      _
    $region27: #{tpu_custom_call.1} parent=1 // pred_check_branch
      %74 = sbr.rel (0) target = $region29
    $region28: #{tpu_custom_call.1} parent=1 // pred_region
      %s76 = ssub.s32 384, 384
      %77 = vsyncadd [#allocation4], %s76
      %s78 = sshll.u32 [#allocation8], 4
      %s79 = int_to_ptr.vmem [resolvable:$true] %s78
      %84 = dma.vmem_to_hbm [thread:$0]  %s79, 384, %s3, [#allocation4], 128, 128, 8
    $region29: #{tpu_custom_call.1} parent=1 // pred_fallthru
      _
    // Predicated region
    $region30: #{tpu_custom_call.1} parent=1 // pred_check
      _
    $region31: #{tpu_custom_call.1} parent=1 // pred_check_branch
      %86 = sbr.rel (0) target = $region33
    $region32: #{tpu_custom_call.1} parent=1 // pred_region
      %87 = dma.done [#allocation4], 384
    $region33: #{tpu_custom_call.1} parent=1 // pred_fallthru
      _
    %88 = vsyncpa [#allocation3], 1
    %89 = vsyncpa [#allocation6], 1
    %90 = vsyncpa [#allocation4], 1

</llo_original>
